<compile_context>
chip_gen: v7x
topology: tpu7x:2x2x1
jax: 0.10.0
libtpu: 0.0.40
codegen_flags: <defaults>
</compile_context>

<pallas_src>
import math

import jax
import jax.numpy as jnp
from jax.experimental import pallas as pl
from jax.experimental.pallas import tpu as pltpu


_VMEM_LIMIT_BYTES = 32 * 1024 * 1024      # valid on v5e/v6e (128 MiB phys) and v7x (64 MiB phys)
_VMEM_BUFFER_BUDGET = 16 * 1024 * 1024    # explicit tile/temporary budget -> headroom under limit


def _round_up(x, m):
    return ((x + m - 1) // m) * m


def _dim_semantics():
    """CORE_PARALLEL splits the row axis across v7x's two TensorCores; plain
    "parallel" elsewhere (measured ~no-op vs "arbitrary" on 1-TC chips)."""
    try:
        kind = jax.devices()[0].device_kind.lower()
    except Exception:
        kind = ""
    if ("v7" in kind or "7x" in kind) and hasattr(pltpu, "CORE_PARALLEL"):
        return (pltpu.CORE_PARALLEL,)
    return ("parallel",)


def _choose_packing(c_out, k, max_lanes=512):
    """Pick (R, C_grp, K_p, L): pack R consecutive im2col rows into one lane row.

    Prefer the smallest R with BOTH (R*C_grp) % 128 == 0 (lane-dense output)
    and (R*K) % 128 == 0 (no zero K-padding in the dominant x read stream and a
    wider MXU N pass).  Fall back to K-padding if no such R fits in max_lanes.
    """
    if c_out % 128 == 0 or 128 % c_out == 0:
        c_grp = c_out
    else:
        c_grp = _round_up(c_out, 128)
    r0 = 128 // math.gcd(c_grp, 128)
    r = None
    m = 1
    while m * r0 * c_grp <= max_lanes:
        cand = m * r0
        if (cand * k) % 128 == 0:
            r = cand
            break
        m += 1
    if r is not None:
        k_p = k
    else:
        r = r0
        k_step = 128 // math.gcd(r, 128)
        k_p = _round_up(k, k_step)
    return r, c_grp, k_p, r * c_grp


def _pick_tm(R, K_p, L, Mp_raw, in_itemsize, out_itemsize,
             budget_bytes=_VMEM_BUFFER_BUDGET, max_tm=2048):
    """Largest packed-row tile keeping double-buffered tiles + in-kernel f32
    temporaries inside the per-generation VMEM budget (v7x 64 MiB is binding)."""
    x_row = 2 * (R * K_p) * in_itemsize                  # double-buffered x tile
    pass1 = x_row + 4 * L * 4                            # acc / y / z^2 / running sums (f32)
    pass2 = x_row + 2 * L * out_itemsize + 2 * L * 4     # out dbl-buffered + acc/affine temps
    per_row = max(pass1, pass2)
    tm = max(8, min(max_tm, (budget_bytes // per_row) // 8 * 8))
    return min(tm, _round_up(Mp_raw, 8))


# ----------------------------------------------------------------- kernels ---
def conv_relu_stats_kernel(x_ref, w_ref, b_ref, psum_ref, psq_ref):
    """Pass 1: conv-as-matmul + bias + ReLU; emit per-tile channel sums of the
    relu(bias)-SHIFTED activations (shifted sums: better-conditioned variance,
    and zero-padded rows contribute exactly 0 -> no padding correction needed).

    Partial sums are written as an (8, L) block (sublane r holds the partial
    over rows == r mod 8 of this tile) so every grid step owns its own aligned
    output block and the row axis stays parallel / core-parallel."""
    acc = jnp.dot(x_ref[...], w_ref[...], preferred_element_type=jnp.float32)
    y = jnp.maximum(acc + b_ref[...], 0.0)               # f32 post-matmul math (v5e-safe)
    z = y - jnp.maximum(b_ref[...], 0.0)                 # shift by relu(bias)
    tm, lanes = z.shape
    zk = z.reshape(tm // 8, 8, lanes)                    # (8,L)-aligned view, no data movement
    psum_ref[...] = jnp.sum(zk, axis=0)                  # VALU-only reduction
    psq_ref[...] = jnp.sum(zk * zk, axis=0)


def conv_relu_bn_kernel(x_ref, w_ref, b_ref, scale_ref, shift_ref, o_ref):
    """Pass 2: recompute conv + bias + ReLU, apply BN affine, single HBM write."""
    acc = jnp.dot(x_ref[...], w_ref[...], preferred_element_type=jnp.float32)
    y = jnp.maximum(acc + b_ref[...], 0.0)
    o_ref[...] = (y * scale_ref[...] + shift_ref[...]).astype(o_ref.dtype)


# ----------------------------------------------------------------- wrapper ---
def node_inv_conv_forward(x, w, b, gamma, beta, *, stride, padding, eps=1e-5,
                          compute_dtype=jnp.bfloat16, out_dtype=jnp.float32):
    B, T, V, H = x.shape
    C_out, C_in, ksize = w.shape
    assert C_in == H

    # ---- glue (plain JAX): cheap layout + slice-based im2col --------------------
    # Cast to the matmul dtype FIRST so the transpose / pad / tap-slices move half
    # the bytes.  (B,T,V,H)->(B,V,T,H) keeps H minor-most (lane-preserving), unlike
    # the torch permute(0,2,3,1); the im2col below is k-major / H-minor to match.
    xc = jnp.transpose(x.astype(compute_dtype), (0, 2, 1, 3)).reshape(B * V, T, H)
    T_out = (T + 2 * padding - ksize) // stride + 1
    x_pad = jnp.pad(xc, ((0, 0), (padding, padding), (0, 0)))
    taps = [x_pad[:, k:k + (T_out - 1) * stride + 1:stride, :] for k in range(ksize)]
    xcol = jnp.concatenate(taps, axis=-1).reshape(B * V * T_out, ksize * H)
    M, K = xcol.shape
    # TODO(synk): the remaining ksize-fold read inflation could be removed by doing
    # the im2col in-kernel (halo DMA + ksize shifted matmuls); kept host-side here.

    # ---- lane-dense packed layout ------------------------------------------------
    R, C_grp, K_p, L = _choose_packing(C_out, K)
    Mp_raw = -(-M // R)
    in_itemsize = jnp.dtype(compute_dtype).itemsize
    out_itemsize = jnp.dtype(out_dtype).itemsize
    tm = _pick_tm(R, K_p, L, Mp_raw, in_itemsize, out_itemsize)
    Mp = _round_up(Mp_raw, tm)
    M_pad = Mp * R
    n_tiles = Mp // tm

    # Packed im2col input: (Mp, R*K_p); contiguous row-pad + free reshape.
    xcol_p = jnp.pad(xcol, ((0, M_pad - M), (0, K_p - K))).reshape(Mp, R * K_p)

    # Weight flattened tap-major / H-minor to match xcol's per-row layout, then
    # block-diagonal so y_packed = xcol_p @ w_big (lane r*C_grp + c == channel c).
    w_flat = jnp.transpose(w, (0, 2, 1)).reshape(C_out, K).astype(jnp.float32)
    w_mat = jnp.pad(w_flat.T, ((0, K_p - K), (0, C_grp - C_out)))          # (K_p, C_grp)
    w_big = jnp.kron(jnp.eye(R, dtype=jnp.float32), w_mat).astype(compute_dtype)

    b_grp = jnp.pad(b.astype(jnp.float32), (0, C_grp - C_out))
    b_lane = jnp.tile(b_grp, R).reshape(1, L)

    grid = (n_tiles,)
    x_spec = pl.BlockSpec((tm, R * K_p), lambda i: (i, 0))
    w_spec = pl.BlockSpec((R * K_p, L), lambda i: (0, 0))
    vec_spec = pl.BlockSpec((1, L), lambda i: (0, 0))
    cparams = pltpu.CompilerParams(dimension_semantics=_dim_semantics(),
                                   vmem_limit_bytes=_VMEM_LIMIT_BYTES)

    # ---- pass 1: conv + bias + relu + per-tile shifted channel stats --------------
    psum, psq = pl.pallas_call(
        conv_relu_stats_kernel,
        out_shape=(
            jax.ShapeDtypeStruct((8 * n_tiles, L), jnp.float32),
            jax.ShapeDtypeStruct((8 * n_tiles, L), jnp.float32),
        ),
        grid_spec=pltpu.PrefetchScalarGridSpec(
            num_scalar_prefetch=0,
            grid=grid,
            in_specs=[x_spec, w_spec, vec_spec],
            out_specs=[pl.BlockSpec((8, L), lambda i: (i, 0)),
                       pl.BlockSpec((8, L), lambda i: (i, 0))],
        ),
        compiler_params=cparams,
    )(xcol_p, w_big, b_lane)

    # ---- tiny per-channel math (plain JAX) -----------------------------------------
    # Stats were shifted by relu(bias); zero-padded rows contribute exactly 0.
    relu_b = jnp.maximum(b.astype(jnp.float32), 0.0)
    sum_z = psum.sum(axis=0).reshape(R, C_grp).sum(axis=0)[:C_out]
    sum_z2 = psq.sum(axis=0).reshape(R, C_grp).sum(axis=0)[:C_out]
    mean_z = sum_z / M
    mean = mean_z + relu_b
    var = jnp.maximum(sum_z2 / M - mean_z * mean_z, 0.0)   # clamp residual cancellation
    inv_std = jax.lax.rsqrt(var + eps)
    scale = gamma.astype(jnp.float32) * inv_std
    shift = beta.astype(jnp.float32) - mean * scale
    scale_lane = jnp.tile(jnp.pad(scale, (0, C_grp - C_out)), R).reshape(1, L)
    shift_lane = jnp.tile(jnp.pad(shift, (0, C_grp - C_out)), R).reshape(1, L)

    # ---- pass 2: recompute conv+relu, apply BN affine, single HBM write ------------
    out_p = pl.pallas_call(
        conv_relu_bn_kernel,
        out_shape=jax.ShapeDtypeStruct((Mp, L), out_dtype),
        grid_spec=pltpu.PrefetchScalarGridSpec(
            num_scalar_prefetch=0,
            grid=grid,
            in_specs=[x_spec, w_spec, vec_spec, vec_spec, vec_spec],
            out_specs=pl.BlockSpec((tm, L), lambda i: (i, 0)),
        ),
        compiler_params=cparams,
    )(xcol_p, w_big, b_lane, scale_lane, shift_lane)

    # ---- glue: unpack + crop + back to (B, T_out, V, C_out) ------------------------
    out_flat = out_p.reshape(M_pad, C_grp)[:M, :C_out]
    return out_flat.reshape(B, V, T_out, C_out).transpose(0, 2, 1, 3)


# ---------------------------------------------------------------- reference ---
def _reference_forward(x, w, b, gamma, beta, *, stride, padding, eps=1e-5):
    """Pure-JAX reference mirroring the PyTorch module (training-mode BN)."""
    B, T, V, H = x.shape
    C_out = w.shape[0]
    xr = jnp.transpose(x, (0, 2, 3, 1)).reshape(B * V, H, T).astype(jnp.float32)
    conv = jax.lax.conv_general_dilated(
        xr, w.astype(jnp.float32), window_strides=(stride,),
        padding=[(padding, padding)],
        dimension_numbers=("NCH", "OIH", "NCH"),
    ) + b.reshape(1, C_out, 1).astype(jnp.float32)
    r = jnp.maximum(conv, 0.0)
    mean = r.mean(axis=(0, 2))
    var = ((r - mean[None, :, None]) ** 2).mean(axis=(0, 2))
    bn = (r - mean[None, :, None]) / jnp.sqrt(var + eps)[None, :, None]
    bn = bn * gamma[None, :, None].astype(jnp.float32) + beta[None, :, None].astype(jnp.float32)
    T_out = r.shape[-1]
    return bn.reshape(B, V, C_out, T_out).transpose(0, 3, 1, 2)


if __name__ == "__main__":
    # node_inv_conv(in_channel=H, out_channel=16, kernel_size=3, stride=1, padding=1)
    B, T, V, H = 2, 16, 4, 8
    C_out, ksize, stride, padding = 16, 3, 1, 1

    key = jax.random.PRNGKey(0)
    kx, kw, kb = jax.random.split(key, 3)
    x = jax.random.normal(kx, (B, T, V, H), dtype=jnp.float32)
    fan_in = H * ksize
    w = jax.random.normal(kw, (C_out, H, ksize), dtype=jnp.float32) / jnp.sqrt(fan_in)
    b = jax.random.normal(kb, (C_out,), dtype=jnp.float32) * 0.1
    gamma = jnp.ones((C_out,), dtype=jnp.float32)   # BatchNorm1d weight init
    beta = jnp.zeros((C_out,), dtype=jnp.float32)   # BatchNorm1d bias init

    # 1) exact-precision run: validates kernel logic against the f32 reference.
    out_f32 = node_inv_conv_forward(x, w, b, gamma, beta, stride=stride,
                                    padding=padding, compute_dtype=jnp.float32)
    out_f32 = jax.block_until_ready(out_f32)
    ref = _reference_forward(x, w, b, gamma, beta, stride=stride, padding=padding)
    assert out_f32.shape == (B, T, V, C_out), out_f32.shape
    assert jnp.allclose(out_f32, ref, atol=1e-4, rtol=1e-4), \
        float(jnp.max(jnp.abs(out_f32 - ref)))

    # 2) performance-default run: bf16 matmul operands (f32 accumulation and
    #    f32 post-matmul math).  Compare against a reference fed the same
    #    bf16-rounded x/w so the check stays tight.
    out_bf16 = node_inv_conv_forward(x, w, b, gamma, beta, stride=stride, padding=padding)
    out_bf16 = jax.block_until_ready(out_bf16)
    xq = x.astype(jnp.bfloat16).astype(jnp.float32)
    wq = w.astype(jnp.bfloat16).astype(jnp.float32)
    ref_bf16 = _reference_forward(xq, wq, b, gamma, beta, stride=stride, padding=padding)
    assert out_bf16.shape == (B, T, V, C_out), out_bf16.shape
    assert jnp.allclose(out_bf16, ref_bf16, atol=2e-3, rtol=2e-3), \
        float(jnp.max(jnp.abs(out_bf16 - ref_bf16)))

    print("KERNEL_OK")
</pallas_src>

<mosaic_0001>
module attributes {stable_mosaic.version = 11 : i64} {
  func.func @conv_relu_stats_kernel(%arg0: i32, %arg1: memref<8x384xf32, #tpu.memory_space<vmem>>, %arg2: memref<384x256xf32, #tpu.memory_space<vmem>>, %arg3: memref<1x256xf32, #tpu.memory_space<vmem>>, %arg4: memref<8x256xf32, #tpu.memory_space<vmem>>, %arg5: memref<8x256xf32, #tpu.memory_space<vmem>>) attributes {dimension_semantics = [#tpu.dimension_semantics<parallel>], iteration_bounds = array<i64: 1>, scalar_prefetch = 0 : i64, scratch_operands = 0 : i64, tpu.core_type = #tpu.core_type<tc>, window_params = [{transform_indices = @transform_0, window_bounds = array<i64: 8, 384>}, {pipeline_mode = #tpu.pipeline_mode<synchronous>, transform_indices = @transform_1, window_bounds = array<i64: 384, 256>}, {pipeline_mode = #tpu.pipeline_mode<synchronous>, transform_indices = @transform_2, window_bounds = array<i64: 1, 256>}, {transform_indices = @transform_3, window_bounds = array<i64: 8, 256>}, {transform_indices = @transform_4, window_bounds = array<i64: 8, 256>}]} {
    %c0 = arith.constant 0 : index
    %c0_0 = arith.constant 0 : index
    %0 = vector.load %arg1[%c0, %c0_0] : memref<8x384xf32, #tpu.memory_space<vmem>>, vector<8x384xf32>
    %c0_1 = arith.constant 0 : index
    %c0_2 = arith.constant 0 : index
    %1 = vector.load %arg2[%c0_1, %c0_2] : memref<384x256xf32, #tpu.memory_space<vmem>>, vector<384x256xf32>
    %cst = arith.constant dense<0.000000e+00> : vector<8x256xf32>
    %2 = tpu.matmul %0, %1, %cst {dimension_numbers = #tpu.dot_dimension_numbers<[1], [0], [0], [1], [0, 0, 1, 1], [], []>} : vector<8x384xf32>, vector<384x256xf32>, vector<8x256xf32> -> vector<8x256xf32>
    %c0_3 = arith.constant 0 : index
    %c0_4 = arith.constant 0 : index
    %3 = vector.load %arg3[%c0_3, %c0_4] : memref<1x256xf32, #tpu.memory_space<vmem>>, vector<1x256xf32>
    %4 = vector.broadcast %3 : vector<1x256xf32> to vector<8x256xf32>
    %5 = arith.addf %2, %4 : vector<8x256xf32>
    %cst_5 = arith.constant 0.000000e+00 : f32
    %6 = vector.broadcast %cst_5 : f32 to vector<8x256xf32>
    %7 = arith.maximumf %5, %6 : vector<8x256xf32>
    %c0_6 = arith.constant 0 : index
    %c0_7 = arith.constant 0 : index
    %8 = vector.load %arg3[%c0_6, %c0_7] : memref<1x256xf32, #tpu.memory_space<vmem>>, vector<1x256xf32>
    %cst_8 = arith.constant 0.000000e+00 : f32
    %9 = vector.broadcast %cst_8 : f32 to vector<1x256xf32>
    %10 = arith.maximumf %8, %9 : vector<1x256xf32>
    %11 = vector.broadcast %10 : vector<1x256xf32> to vector<8x256xf32>
    %12 = arith.subf %7, %11 : vector<8x256xf32>
    %13 = vector.shape_cast %12 : vector<8x256xf32> to vector<1x8x256xf32>
    %cst_9 = arith.constant dense<0.000000e+00> : vector<8x256xf32>
    %14 = vector.multi_reduction <add>, %13, %cst_9 [0] : vector<1x8x256xf32> to vector<8x256xf32>
    %c0_10 = arith.constant 0 : index
    %c0_11 = arith.constant 0 : index
    %15 = vector.load %arg4[%c0_10, %c0_11] : memref<8x256xf32, #tpu.memory_space<vmem>>, vector<8x256xf32>
    tpu.vector_store %arg4[%c0_10, %c0_11], %14 {strides = array<i32>} : memref<8x256xf32, #tpu.memory_space<vmem>>, vector<8x256xf32>,
    %16 = arith.mulf %13, %13 : vector<1x8x256xf32>
    %cst_12 = arith.constant dense<0.000000e+00> : vector<8x256xf32>
    %17 = vector.multi_reduction <add>, %16, %cst_12 [0] : vector<1x8x256xf32> to vector<8x256xf32>
    %c0_13 = arith.constant 0 : index
    %c0_14 = arith.constant 0 : index
    %18 = vector.load %arg5[%c0_13, %c0_14] : memref<8x256xf32, #tpu.memory_space<vmem>>, vector<8x256xf32>
    tpu.vector_store %arg5[%c0_13, %c0_14], %17 {strides = array<i32>} : memref<8x256xf32, #tpu.memory_space<vmem>>, vector<8x256xf32>,
    return
  }
  func.func @transform_0(%arg0: i32) -> (i32, i32) {
    %c0_i32 = arith.constant 0 : i32
    %c0_i32_0 = arith.constant 0 : i32
    return %arg0, %c0_i32 : i32, i32
  }
  func.func @transform_1(%arg0: i32) -> (i32, i32) {
    %c0_i32 = arith.constant 0 : i32
    %c0_i32_0 = arith.constant 0 : i32
    %c0_i32_1 = arith.constant 0 : i32
    return %c0_i32, %c0_i32_0 : i32, i32
  }
  func.func @transform_2(%arg0: i32) -> (i32, i32) {
    %c0_i32 = arith.constant 0 : i32
    %c0_i32_0 = arith.constant 0 : i32
    %c0_i32_1 = arith.constant 0 : i32
    return %c0_i32, %c0_i32_0 : i32, i32
  }
  func.func @transform_3(%arg0: i32) -> (i32, i32) {
    %c0_i32 = arith.constant 0 : i32
    %c0_i32_0 = arith.constant 0 : i32
    return %arg0, %c0_i32 : i32, i32
  }
  func.func @transform_4(%arg0: i32) -> (i32, i32) {
    %c0_i32 = arith.constant 0 : i32
    %c0_i32_0 = arith.constant 0 : i32
    return %arg0, %c0_i32 : i32, i32
  }
}

</mosaic_0001>

<llo_original>
// kernel: tpu_custom_call.1
$region0: #{tpu_custom_call.1}
  #allocation0 [shape = 'u32[]', space=smem, size = 0x4, offset = 0x4, fixed_abs, tag = 'smem constant byte address 0x4 - core index']
  #allocation1 [shape = 'u32[144,128]{1,0:T(1,128)}', space=vmem, size = 0x12000, scoped, tag = 'internal scratch']
  %s0 = inlined_call_operand.hbm [shape: f32[8,384], index: 0, kind: input, shape index: {}]
  %s1 = inlined_call_operand.hbm [shape: f32[384,256], index: 1, kind: input, shape index: {}]
  %s2 = inlined_call_operand.vmem [shape: f32[1,256], index: 2, kind: input, shape index: {}]
  %s3 = inlined_call_operand.hbm [shape: f32[8,256], index: 3, kind: output, shape index: {0}]
  %s4 = inlined_call_operand.hbm [shape: f32[8,256], index: 4, kind: output, shape index: {1}]
  %5 = xla_tuple %s3, %s4
  %s6 = sld [smem:[#allocation0]]
  $region38: #{tpu_custom_call.1} parent=0
    _
  %s8 = ssub.s32 1, %s6
  %s9 = scalar_select 0, %s8, %s6
  $region1: #{tpu_custom_call.1} parent=0
    #allocation2 [shape = 'u8[12288]{0}', space=vmem, size = 0x3000, scoped, tag = 'input window, operand 0, single buffered']
    #allocation3 [shape = 's32[1]{0}', space=sflag, size = 0x4, scoped, tag = 'scoped memory for tpu_custom_call.1']
    #allocation4 [shape = 's32[1]{0}', space=sflag, size = 0x4, scoped, tag = 'scoped memory for tpu_custom_call.1']
    #allocation5 [shape = 'u8[393216]{0}', space=vmem, size = 0x60000, scoped, tag = 'input window, operand 1, single buffered']
    #allocation6 [shape = 's32[1]{0}', space=sflag, size = 0x4, scoped, tag = 'scoped memory for tpu_custom_call.1']
    #allocation7 [shape = 'u8[8192]{0}', space=vmem, size = 0x2000, scoped, tag = 'output window, operand 0, single buffered']
    #allocation8 [shape = 'u8[8192]{0}', space=vmem, size = 0x2000, scoped, tag = 'output window, operand 1, single buffered']
    #allocation9 [shape = 's32[1]{0}', space=sflag, size = 0x4, scoped, tag = 'scoped memory for tpu_custom_call.1']
    %10 = vsyncpa [#allocation3], 0
    %11 = vsyncpa [#allocation6], 0
    %12 = vsyncpa [#allocation4], 0
    %13 = vsyncpa [#allocation9], 0
    // Predicated region
    $region2: #{tpu_custom_call.1} parent=1 // pred_check
      _
    $region3: #{tpu_custom_call.1} parent=1 // pred_check_branch
      %15 = sbr.rel (0) target = $region5
    $region4: #{tpu_custom_call.1} parent=1 // pred_region
      %s17 = ssub.s32 384, 384
      %18 = vsyncadd [#allocation3], %s17
      %s20 = sshll.u32 [#allocation2], 4
      %s21 = int_to_ptr.vmem [resolvable:$true] %s20
      %23 = dma.hbm_to_vmem [thread:$0]  %s0, 384, %s21, [#allocation3]
    $region5: #{tpu_custom_call.1} parent=1 // pred_fallthru
      _
    // Predicated region
    $region6: #{tpu_custom_call.1} parent=1 // pred_check
      _
    $region7: #{tpu_custom_call.1} parent=1 // pred_check_branch
      %25 = sbr.rel (0) target = $region9
    $region8: #{tpu_custom_call.1} parent=1 // pred_region
      %s27 = ssub.s32 12288, 12288
      %28 = vsyncadd [#allocation6], %s27
      %s29 = sshll.u32 [#allocation5], 4
      %s30 = int_to_ptr.vmem [resolvable:$true] %s29
      %35 = dma.hbm_to_vmem [thread:$0]  %s1, 12288, %s30, [#allocation6], 256, 256, 16
    $region9: #{tpu_custom_call.1} parent=1 // pred_fallthru
      _
    // Predicated region
    $region10: #{tpu_custom_call.1} parent=1 // pred_check
      _
    $region11: #{tpu_custom_call.1} parent=1 // pred_check_branch
      %37 = sbr.rel (0) target = $region13
    $region12: #{tpu_custom_call.1} parent=1 // pred_region
      _
    $region13: #{tpu_custom_call.1} parent=1 // pred_fallthru
      _
    // Predicated region
    $region14: #{tpu_custom_call.1} parent=1 // pred_check
      _
    $region15: #{tpu_custom_call.1} parent=1 // pred_check_branch
      %39 = sbr.rel (0) target = $region17
    $region16: #{tpu_custom_call.1} parent=1 // pred_region
      %40 = dma.done [#allocation3], 384
    $region17: #{tpu_custom_call.1} parent=1 // pred_fallthru
      _
    // Predicated region
    $region18: #{tpu_custom_call.1} parent=1 // pred_check
      _
    $region19: #{tpu_custom_call.1} parent=1 // pred_check_branch
      %42 = sbr.rel (0) target = $region21
    $region20: #{tpu_custom_call.1} parent=1 // pred_region
      %43 = dma.done [#allocation6], 12288
    $region21: #{tpu_custom_call.1} parent=1 // pred_fallthru
      _
    %v44 = vld [vmem:[#allocation2] sm:$0xff]
    %v45 = vld [vmem:[#allocation2 + $0x8] sm:$0xff]
    %v46 = vld [vmem:[#allocation2 + $0x10] sm:$0xff]
    %v47 = vld [vmem:[#allocation5] sm:$0xff]
    %v48 = vld [vmem:[#allocation5 + $0x8] sm:$0xff]
    %v49 = vld [vmem:[#allocation5 + $0x10] sm:$0xff]
    %v50 = vld [vmem:[#allocation5 + $0x18] sm:$0xff]
    %v51 = vld [vmem:[#allocation5 + $0x20] sm:$0xff]
    %v52 = vld [vmem:[#allocation5 + $0x28] sm:$0xff]
    %v53 = vld [vmem:[#allocation5 + $0x30] sm:$0xff]
    %v54 = vld [vmem:[#allocation5 + $0x38] sm:$0xff]
    %v55 = vld [vmem:[#allocation5 + $0x40] sm:$0xff]
    %v56 = vld [vmem:[#allocation5 + $0x48] sm:$0xff]
    %v57 = vld [vmem:[#allocation5 + $0x50] sm:$0xff]
    %v58 = vld [vmem:[#allocation5 + $0x58] sm:$0xff]
    %v59 = vld [vmem:[#allocation5 + $0x60] sm:$0xff]
    %v60 = vld [vmem:[#allocation5 + $0x68] sm:$0xff]
    %v61 = vld [vmem:[#allocation5 + $0x70] sm:$0xff]
    %v62 = vld [vmem:[#allocation5 + $0x78] sm:$0xff]
    %v63 = vld [vmem:[#allocation5 + $0x80] sm:$0xff]
    %v64 = vld [vmem:[#allocation5 + $0x88] sm:$0xff]
    %v65 = vld [vmem:[#allocation5 + $0x90] sm:$0xff]
    %v66 = vld [vmem:[#allocation5 + $0x98] sm:$0xff]
    %v67 = vld [vmem:[#allocation5 + $0xa0] sm:$0xff]
    %v68 = vld [vmem:[#allocation5 + $0xa8] sm:$0xff]
    %v69 = vld [vmem:[#allocation5 + $0xb0] sm:$0xff]
    %v70 = vld [vmem:[#allocation5 + $0xb8] sm:$0xff]
    %v71 = vld [vmem:[#allocation5 + $0xc0] sm:$0xff]
    %v72 = vld [vmem:[#allocation5 + $0xc8] sm:$0xff]
    %v73 = vld [vmem:[#allocation5 + $0xd0] sm:$0xff]
    %v74 = vld [vmem:[#allocation5 + $0xd8] sm:$0xff]
    %v75 = vld [vmem:[#allocation5 + $0xe0] sm:$0xff]
    %v76 = vld [vmem:[#allocation5 + $0xe8] sm:$0xff]
    %v77 = vld [vmem:[#allocation5 + $0xf0] sm:$0xff]
    %v78 = vld [vmem:[#allocation5 + $0xf8] sm:$0xff]
    %v79 = vld [vmem:[#allocation5 + $0x100] sm:$0xff]
    %v80 = vld [vmem:[#allocation5 + $0x108] sm:$0xff]
    %v81 = vld [vmem:[#allocation5 + $0x110] sm:$0xff]
    %v82 = vld [vmem:[#allocation5 + $0x118] sm:$0xff]
    %v83 = vld [vmem:[#allocation5 + $0x120] sm:$0xff]
    %v84 = vld [vmem:[#allocation5 + $0x128] sm:$0xff]
    %v85 = vld [vmem:[#allocation5 + $0x130] sm:$0xff]
    %v86 = vld [vmem:[#allocation5 + $0x138] sm:$0xff]
    %v87 = vld [vmem:[#allocation5 + $0x140] sm:$0xff]
    %v88 = vld [vmem:[#allocation5 + $0x148] sm:$0xff]
    %v89 = vld [vmem:[#allocation5 + $0x150] sm:$0xff]
    %v90 = vld [vmem:[#allocation5 + $0x158] sm:$0xff]
    %v91 = vld [vmem:[#allocation5 + $0x160] sm:$0xff]
    %v92 = vld [vmem:[#allocation5 + $0x168] sm:$0xff]
    %v93 = vld [vmem:[#allocation5 + $0x170] sm:$0xff]
    %v94 = vld [vmem:[#allocation5 + $0x178] sm:$0xff]
    %v95 = vld [vmem:[#allocation5 + $0x180] sm:$0xff]
    %v96 = vld [vmem:[#allocation5 + $0x188] sm:$0xff]
    %v97 = vld [vmem:[#allocation5 + $0x190] sm:$0xff]
    %v98 = vld [vmem:[#allocation5 + $0x198] sm:$0xff]
    %v99 = vld [vmem:[#allocation5 + $0x1a0] sm:$0xff]
    %v100 = vld [vmem:[#allocation5 + $0x1a8] sm:$0xff]
    %v101 = vld [vmem:[#allocation5 + $0x1b0] sm:$0xff]
    %v102 = vld [vmem:[#allocation5 + $0x1b8] sm:$0xff]
    %v103 = vld [vmem:[#allocation5 + $0x1c0] sm:$0xff]
    %v104 = vld [vmem:[#allocation5 + $0x1c8] sm:$0xff]
    %v105 = vld [vmem:[#allocation5 + $0x1d0] sm:$0xff]
    %v106 = vld [vmem:[#allocation5 + $0x1d8] sm:$0xff]
    %v107 = vld [vmem:[#allocation5 + $0x1e0] sm:$0xff]
    %v108 = vld [vmem:[#allocation5 + $0x1e8] sm:$0xff]
    %v109 = vld [vmem:[#allocation5 + $0x1f0] sm:$0xff]
    %v110 = vld [vmem:[#allocation5 + $0x1f8] sm:$0xff]
    %v111 = vld [vmem:[#allocation5 + $0x200] sm:$0xff]
    %v112 = vld [vmem:[#allocation5 + $0x208] sm:$0xff]
    %v113 = vld [vmem:[#allocation5 + $0x210] sm:$0xff]
    %v114 = vld [vmem:[#allocation5 + $0x218] sm:$0xff]
    %v115 = vld [vmem:[#allocation5 + $0x220] sm:$0xff]
    %v116 = vld [vmem:[#allocation5 + $0x228] sm:$0xff]
    %v117 = vld [vmem:[#allocation5 + $0x230] sm:$0xff]
    %v118 = vld [vmem:[#allocation5 + $0x238] sm:$0xff]
    %v119 = vld [vmem:[#allocation5 + $0x240] sm:$0xff]
    %v120 = vld [vmem:[#allocation5 + $0x248] sm:$0xff]
    %v121 = vld [vmem:[#allocation5 + $0x250] sm:$0xff]
    %v122 = vld [vmem:[#allocation5 + $0x258] sm:$0xff]
    %v123 = vld [vmem:[#allocation5 + $0x260] sm:$0xff]
    %v124 = vld [vmem:[#allocation5 + $0x268] sm:$0xff]
    %v125 = vld [vmem:[#allocation5 + $0x270] sm:$0xff]
    %v126 = vld [vmem:[#allocation5 + $0x278] sm:$0xff]
    %v127 = vld [vmem:[#allocation5 + $0x280] sm:$0xff]
    %v128 = vld [vmem:[#allocation5 + $0x288] sm:$0xff]
    %v129 = vld [vmem:[#allocation5 + $0x290] sm:$0xff]
    %v130 = vld [vmem:[#allocation5 + $0x298] sm:$0xff]
    %v131 = vld [vmem:[#allocation5 + $0x2a0] sm:$0xff]
    %v132 = vld [vmem:[#allocation5 + $0x2a8] sm:$0xff]
    %v133 = vld [vmem:[#allocation5 + $0x2b0] sm:$0xff]
    %v134 = vld [vmem:[#allocation5 + $0x2b8] sm:$0xff]
    %v135 = vld [vmem:[#allocation5 + $0x2c0] sm:$0xff]
    %v136 = vld [vmem:[#allocation5 + $0x2c8] sm:$0xff]
    %v137 = vld [vmem:[#allocation5 + $0x2d0] sm:$0xff]
    %v138 = vld [vmem:[#allocation5 + $0x2d8] sm:$0xff]
    %v139 = vld [vmem:[#allocation5 + $0x2e0] sm:$0xff]
    %v140 = vld [vmem:[#allocation5 + $0x2e8] sm:$0xff]
    %v141 = vld [vmem:[#allocation5 + $0x2f0] sm:$0xff]
    %v142 = vld [vmem:[#allocation5 + $0x2f8] sm:$0xff]
    %v143 = vld [vmem:[%s2] sm:$0x3]
    %v145 = vlaneseq
    %v146 = vshrl.u32 %v145, 7
    %v147 = vsub.s32 0, %v146
    %v148 = vrot.slane %v143, %v147
    %v149 = vlaneseq
    %v150 = vshrl.u32 %v149, 7
    %v151 = vsub.s32 1, %v150
    %v152 = vrot.slane %v143, %v151
    %155 = vmatprep.subr.mxu0 %v48
    %156 = vmatpush1.msra.mxu0 %v47
    %157 = vmatprep.subr.mxu0 %v50
    %158 = vmatpush1.msra.mxu0 %v49
    %159 = vmatprep.subr.mxu0 %v52
    %160 = vmatpush1.msra.mxu0 %v51
    %161 = vmatprep.subr.mxu0 %v54
    %162 = vmatpush1.msra.mxu0 %v53
    %163 = vmatprep.subr.mxu0 %v56
    %164 = vmatpush1.msra.mxu0 %v55
    %165 = vmatprep.subr.mxu0 %v58
    %166 = vmatpush1.msra.mxu0 %v57
    %167 = vmatprep.subr.mxu0 %v60
    %168 = vmatpush1.msra.mxu0 %v59
    %169 = vmatprep.subr.mxu0 %v62
    %170 = vmatpush1.msra.mxu0 %v61
    %171 = vmatprep.subr.mxu0 %v64
    %172 = vmatpush1.msra.mxu0 %v63
    %173 = vmatprep.subr.mxu0 %v66
    %174 = vmatpush1.msra.mxu0 %v65
    %175 = vmatprep.subr.mxu0 %v68
    %176 = vmatpush1.msra.mxu0 %v67
    %177 = vmatprep.subr.mxu0 %v70
    %178 = vmatpush1.msra.mxu0 %v69
    %179 = vmatprep.subr.mxu0 %v72
    %180 = vmatpush1.msra.mxu0 %v71
    %181 = vmatprep.subr.mxu0 %v74
    %182 = vmatpush1.msra.mxu0 %v73
    %183 = vmatprep.subr.mxu0 %v76
    %184 = vmatpush1.msra.mxu0 %v75
    %185 = vmatprep.subr.mxu0 %v78
    %186 = vmatpush1.msra.mxu0 %v77
    %187 = vmatprep.subr.mxu0 %v80
    %188 = vmatpush1.msra.mxu0 %v79
    %189 = vmatprep.subr.mxu0 %v82
    %190 = vmatpush1.msra.mxu0 %v81
    %191 = vmatprep.subr.mxu0 %v84
    %192 = vmatpush1.msra.mxu0 %v83
    %193 = vmatprep.subr.mxu0 %v86
    %194 = vmatpush1.msra.mxu0 %v85
    %195 = vmatprep.subr.mxu0 %v88
    %196 = vmatpush1.msra.mxu0 %v87
    %197 = vmatprep.subr.mxu0 %v90
    %198 = vmatpush1.msra.mxu0 %v89
    %199 = vmatprep.subr.mxu0 %v92
    %200 = vmatpush1.msra.mxu0 %v91
    %201 = vmatprep.subr.mxu0 %v94
    %202 = vmatpush1.msra.mxu0 %v93
    %203 = vmatprep.subr.mxu0 %v96
    %204 = vmatpush1.msra.mxu0 %v95
    %205 = vmatprep.subr.mxu0 %v98
    %206 = vmatpush1.msra.mxu0 %v97
    %207 = vmatprep.subr.mxu0 %v100
    %208 = vmatpush1.msra.mxu0 %v99
    %209 = vmatprep.subr.mxu0 %v102
    %210 = vmatpush1.msra.mxu0 %v101
    %211 = vmatprep.subr.mxu0 %v104
    %212 = vmatpush1.msra.mxu0 %v103
    %213 = vmatprep.subr.mxu0 %v106
    %214 = vmatpush1.msra.mxu0 %v105
    %215 = vmatprep.subr.mxu0 %v108
    %216 = vmatpush1.msra.mxu0 %v107
    %217 = vmatprep.subr.mxu0 %v110
    %218 = vmatpush1.msra.mxu0 %v109
    %219 = vmatprep.mubr.f32.mxu0 %v45
    %220 = vmatmul.mubr.f32.gmra.mrb[0].mxu0 %v44
    %v221 = vpop.f32.mrb[0].mxu0
    %v222 = vadd.f32 %v148, %v221
    %v223 = vpop.f32.mrb[0].mxu0
    %v224 = vadd.f32 %v152, %v223
    %225 = vdwg.mxu0
    %226 = vmatprep.subr.mxu0 %v112
    %227 = vmatpush1.msra.mxu0 %v111
    %228 = vmatprep.subr.mxu0 %v114
    %229 = vmatpush1.msra.mxu0 %v113
    %230 = vmatprep.subr.mxu0 %v116
    %231 = vmatpush1.msra.mxu0 %v115
    %232 = vmatprep.subr.mxu0 %v118
    %233 = vmatpush1.msra.mxu0 %v117
    %234 = vmatprep.subr.mxu0 %v120
    %235 = vmatpush1.msra.mxu0 %v119
    %236 = vmatprep.subr.mxu0 %v122
    %237 = vmatpush1.msra.mxu0 %v121
    %238 = vmatprep.subr.mxu0 %v124
    %239 = vmatpush1.msra.mxu0 %v123
    %240 = vmatprep.subr.mxu0 %v126
    %241 = vmatpush1.msra.mxu0 %v125
    %242 = vmatprep.subr.mxu0 %v128
    %243 = vmatpush1.msra.mxu0 %v127
    %244 = vmatprep.subr.mxu0 %v130
    %245 = vmatpush1.msra.mxu0 %v129
    %246 = vmatprep.subr.mxu0 %v132
    %247 = vmatpush1.msra.mxu0 %v131
    %248 = vmatprep.subr.mxu0 %v134
    %249 = vmatpush1.msra.mxu0 %v133
    %250 = vmatprep.subr.mxu0 %v136
    %251 = vmatpush1.msra.mxu0 %v135
    %252 = vmatprep.subr.mxu0 %v138
    %253 = vmatpush1.msra.mxu0 %v137
    %254 = vmatprep.subr.mxu0 %v140
    %255 = vmatpush1.msra.mxu0 %v139
    %256 = vmatprep.subr.mxu0 %v142
    %257 = vmatpush1.msra.mxu0 %v141
    %258 = vmatprep.subr.mxu0 0.0
    %259 = vmatpush1.msra.mxu0 0.0
    %260 = vmatprep.subr.mxu0 0.0
    %261 = vmatpush1.msra.mxu0 0.0
    %262 = vmatprep.subr.mxu0 0.0
    %263 = vmatpush1.msra.mxu0 0.0
    %264 = vmatprep.subr.mxu0 0.0
    %265 = vmatpush1.msra.mxu0 0.0
    %266 = vmatprep.subr.mxu0 0.0
    %267 = vmatpush1.msra.mxu0 0.0
    %268 = vmatprep.subr.mxu0 0.0
    %269 = vmatpush1.msra.mxu0 0.0
    %270 = vmatprep.subr.mxu0 0.0
    %271 = vmatpush1.msra.mxu0 0.0
    %272 = vmatprep.subr.mxu0 0.0
    %273 = vmatpush1.msra.mxu0 0.0
    %274 = vmatprep.subr.mxu0 0.0
    %275 = vmatpush1.msra.mxu0 0.0
    %276 = vmatprep.subr.mxu0 0.0
    %277 = vmatpush1.msra.mxu0 0.0
    %278 = vmatprep.subr.mxu0 0.0
    %279 = vmatpush1.msra.mxu0 0.0
    %280 = vmatprep.subr.mxu0 0.0
    %281 = vmatpush1.msra.mxu0 0.0
    %282 = vmatprep.subr.mxu0 0.0
    %283 = vmatpush1.msra.mxu0 0.0
    %284 = vmatprep.subr.mxu0 0.0
    %285 = vmatpush1.msra.mxu0 0.0
    %286 = vmatprep.subr.mxu0 0.0
    %287 = vmatpush1.msra.mxu0 0.0
    %288 = vmatprep.subr.mxu0 0.0
    %289 = vmatpush1.msra.mxu0 0.0
    %290 = vmatprep.mubr.f32.mxu0 0.0
    %291 = vmatmul.mubr.f32.gmra.mrb[0].mxu0 %v46
    %v292 = vpop.f32.mrb[0].mxu0
    %v293 = vadd.f32 %v222, %v292
    %v294 = vpop.f32.mrb[0].mxu0
    %v295 = vadd.f32 %v224, %v294
    %296 = vdwg.mxu0
    %v297 = vmax.f32 %v293, 0.0
    %v298 = vmax.f32 %v295, 0.0
    %v299 = vmax.f32 %v143, 0.0
    %v301 = vlaneseq
    %v302 = vshrl.u32 %v301, 7
    %v303 = vsub.s32 0, %v302
    %v304 = vrot.slane %v299, %v303
    %v305 = vlaneseq
    %v306 = vshrl.u32 %v305, 7
    %v307 = vsub.s32 1, %v306
    %v308 = vrot.slane %v299, %v307
    %v311 = vsub.f32 %v297, %v304
    %v312 = vsub.f32 %v298, %v308
    %v313 = vadd.f32 %v311, 0.0
    %v314 = vadd.f32 %v312, 0.0
    %315 = vst [vmem:[#allocation7] sm:$0xff] %v313
    %316 = vst [vmem:[#allocation7 + $0x8] sm:$0xff] %v314
    %v317 = vmul.f32 %v311, %v311
    %v318 = vmul.f32 %v312, %v312
    %v319 = vadd.f32 %v317, 0.0
    %v320 = vadd.f32 %v318, 0.0
    %321 = vst [vmem:[#allocation8] sm:$0xff] %v319
    %322 = vst [vmem:[#allocation8 + $0x8] sm:$0xff] %v320
    // Predicated region
    $region22: #{tpu_custom_call.1} parent=1 // pred_check
      _
    $region23: #{tpu_custom_call.1} parent=1 // pred_check_branch
      %324 = sbr.rel (0) target = $region25
    $region24: #{tpu_custom_call.1} parent=1 // pred_region
      %s326 = ssub.s32 256, 256
      %327 = vsyncadd [#allocation4], %s326
      %s329 = sshll.u32 [#allocation7], 4
      %s330 = int_to_ptr.vmem [resolvable:$true] %s329
      %332 = dma.vmem_to_hbm [thread:$0]  %s330, 256, %s3, [#allocation4]
    $region25: #{tpu_custom_call.1} parent=1 // pred_fallthru
      _
    // Predicated region
    $region26: #{tpu_custom_call.1} parent=1 // pred_check
      _
    $region27: #{tpu_custom_call.1} parent=1 // pred_check_branch
      %334 = sbr.rel (0) target = $region29
    $region28: #{tpu_custom_call.1} parent=1 // pred_region
      %s336 = ssub.s32 256, 256
      %337 = vsyncadd [#allocation9], %s336
      %s339 = sshll.u32 [#allocation8], 4
      %s340 = int_to_ptr.vmem [resolvable:$true] %s339
      %342 = dma.vmem_to_hbm [thread:$0]  %s340, 256, %s4, [#allocation9]
    $region29: #{tpu_custom_call.1} parent=1 // pred_fallthru
      _
    // Predicated region
    $region30: #{tpu_custom_call.1} parent=1 // pred_check
      _
    $region31: #{tpu_custom_call.1} parent=1 // pred_check_branch
      %344 = sbr.rel (0) target = $region33
    $region32: #{tpu_custom_call.1} parent=1 // pred_region
      %345 = dma.done [#allocation4], 256
    $region33: #{tpu_custom_call.1} parent=1 // pred_fallthru
      _
    // Predicated region
    $region34: #{tpu_custom_call.1} parent=1 // pred_check
      _
    $region35: #{tpu_custom_call.1} parent=1 // pred_check_branch
      %347 = sbr.rel (0) target = $region37
    $region36: #{tpu_custom_call.1} parent=1 // pred_region
      %348 = dma.done [#allocation9], 256
    $region37: #{tpu_custom_call.1} parent=1 // pred_fallthru
      _
    %349 = vsyncpa [#allocation3], 1
    %350 = vsyncpa [#allocation6], 1
    %351 = vsyncpa [#allocation4], 1
    %352 = vsyncpa [#allocation9], 1

</llo_original>
